<compile_context>
chip_gen: v6e
topology: v6e:2x2x1
jax: 0.10.0
libtpu: 0.0.40
codegen_flags: <defaults>
</compile_context>

<pallas_src>
import functools

import jax
import jax.numpy as jnp
from jax import lax
from jax.experimental import pallas as pl
from jax.experimental.pallas import tpu as pltpu


# --------------------------- generation detection ----------------------------
def _tpu_kind():
    try:
        return jax.devices()[0].device_kind.lower()
    except Exception:
        return ""


def _default_compute_dtype():
    # bf16 MXU operands on v6e/v7x (native MXU format, half the resident-weight
    # footprint); f32 elsewhere (v5e VPU/EUP have no bf16, keep casts at MXU
    # boundaries only).  Softmax / bias adds / accumulation are f32 regardless.
    kind = _tpu_kind()
    if ("v6" in kind) or ("v7" in kind):
        return jnp.bfloat16
    return jnp.float32


def _vmem_limit_bytes():
    # Per-generation VMEM budget: half of physical capacity leaves headroom for
    # double-buffering (128 MiB physical on v5e/v6e, 64 MiB on v7x).
    cap = None
    try:
        cap = getattr(pltpu.get_tpu_info(), "vmem_capacity_bytes", None)
    except Exception:
        cap = None
    if not cap:
        cap = (64 if "v7" in _tpu_kind() else 128) * 1024 * 1024
    return int(min(cap // 2, 100 * 1024 * 1024))


_VMEM_LIMIT = _vmem_limit_bytes()


def _cparams(semantics):
    return pltpu.CompilerParams(dimension_semantics=tuple(semantics),
                                vmem_limit_bytes=_VMEM_LIMIT)


def _choose_seq_tile(n):
    # Largest 128-multiple tile that divides n exactly.  No padded KV rows are
    # allowed: the legacy softmax denominator is UNMASKED, so garbage keys
    # would pollute it.  Falls back to a single full tile.
    for t in (512, 256, 128):
        if n >= t and n % t == 0:
            return t
    return n


# ----------------------- row-tiled multi-projection kernel -------------------
def _multi_proj_kernel(*refs, n, compute_dtype):
    # refs = (x_0..x_{n-1}, w_0, b_0, ..., w_{n-1}, b_{n-1}, o_0..o_{n-1})
    xs = refs[:n]
    outs = refs[3 * n:]
    for i in range(n):
        w_ref = refs[n + 2 * i]
        b_ref = refs[n + 2 * i + 1]
        acc = jnp.dot(xs[i][...].astype(compute_dtype),
                      w_ref[...].astype(compute_dtype),
                      preferred_element_type=jnp.float32)
        outs[i][...] = (acc + b_ref[...].astype(jnp.float32)).astype(outs[i].dtype)


def multi_row_projection(xs, ws, bs, *, tile_m=512, compute_dtype=jnp.float32):
    """n row-tiled linears in one launch.

    Each x_i: (M, K_i), w_i: (K_i, N_i), b_i: (1, N_i) -> (M, N_i).
    Grid is over row tiles of M (multiples of 8 sublanes); every weight/bias
    stays resident in VMEM across the row tiles.
    """
    m = xs[0].shape[0]
    n = len(xs)
    assert all(x.shape[0] == m for x in xs), "all inputs must share the row count"

    tm = m if m <= tile_m else tile_m
    if tm != m and tm % 8 != 0:
        tm = max(8, (tm // 8) * 8)
    grid = (pl.cdiv(m, tm),)

    operands, in_specs = [], []
    for x in xs:
        in_specs.append(pl.BlockSpec((tm, x.shape[1]), lambda i: (i, 0)))
        operands.append(x)
    for w, b in zip(ws, bs):
        in_specs.append(pl.BlockSpec(w.shape, lambda i: (0, 0)))   # resident weight
        in_specs.append(pl.BlockSpec(b.shape, lambda i: (0, 0)))   # resident bias
        operands.append(w)
        operands.append(b)

    out_shape = tuple(jax.ShapeDtypeStruct((m, w.shape[1]), x.dtype)
                      for x, w in zip(xs, ws))
    out_specs = tuple(pl.BlockSpec((tm, w.shape[1]), lambda i: (i, 0)) for w in ws)

    kernel = functools.partial(_multi_proj_kernel, n=n, compute_dtype=compute_dtype)
    return pl.pallas_call(
        kernel,
        out_shape=out_shape,
        grid=grid,
        in_specs=in_specs,
        out_specs=out_specs,
        compiler_params=_cparams(("parallel",)),
    )(*operands)


# ----------------------------- attention kernel ------------------------------
def _attention_kernel(q_ref, k_ref, v_ref, o_ref, m_sc, l_sc, acc_sc,
                      *, causal, compute_dtype):
    # q_ref: (H, tq, Dh); k_ref/v_ref: (H, tk, Dh) — all heads of one batch.
    kv_idx = pl.program_id(2)

    @pl.when(kv_idx == 0)
    def _init():
        m_sc[...] = jnp.full(m_sc.shape, -jnp.inf, m_sc.dtype)
        l_sc[...] = jnp.zeros_like(l_sc)
        acc_sc[...] = jnp.zeros_like(acc_sc)

    # 1/sqrt(Dh) is already folded into the q-projection weights.
    q = q_ref[...].astype(compute_dtype)
    k = k_ref[...].astype(compute_dtype)
    # Batched QK^T: contract last dims directly (no materialized transpose).
    s = jnp.einsum("htd,hsd->hts", q, k, preferred_element_type=jnp.float32)

    m_prev = m_sc[...]
    m_new = jnp.maximum(m_prev, jnp.max(s, axis=-1, keepdims=True))
    alpha = jnp.exp(m_prev - m_new)
    e = jnp.exp(s - m_new)

    # Legacy semantics: softmax denominator is over ALL keys (the tril is
    # applied AFTER the softmax), so the exp-sum is accumulated UNMASKED.
    l_sc[...] = alpha * l_sc[...] + jnp.sum(e, axis=-1, keepdims=True)

    if causal:
        # Single (1, tq, tk) mask broadcast over heads (built once per body).
        _, tq, tk = e.shape
        row = lax.broadcasted_iota(jnp.int32, (1, tq, tk), 1) + pl.program_id(1) * tq
        col = lax.broadcasted_iota(jnp.int32, (1, tq, tk), 2) + kv_idx * tk
        e = jnp.where(col <= row, e, 0.0)

    acc_sc[...] = alpha * acc_sc[...] + jnp.einsum(
        "hts,hsd->htd", e.astype(compute_dtype), v_ref[...].astype(compute_dtype),
        preferred_element_type=jnp.float32)
    m_sc[...] = m_new

    @pl.when(kv_idx == pl.num_programs(2) - 1)
    def _finalize():
        # Reciprocal deferred to after p@V: touches H*T*Dh elements, not H*T*S;
        # EUP approx reciprocal keeps the divide off the VALU.
        inv_l = pl.reciprocal(l_sc[...], approx=True)
        o_ref[...] = (acc_sc[...] * inv_l).astype(o_ref.dtype)


def fused_attention(q_heads, k_heads, v_heads, num_heads, *, causal=False,
                    compute_dtype=jnp.float32):
    """q: (B*H, T, Dh), k/v: (B*H, S, Dh) -> (B*H, T, Dh), legacy head layout.

    grid = (batch, q tiles, kv tiles); all H heads of a batch per step (batched
    MXU work), online-softmax accumulation over the kv axis so VMEM is
    O(H*tq*Dh + tile) instead of O(H*T*S).
    NOTE: the legacy .view pins the output last dim to Dh, so lane density /
    vst masking of the attention output is bounded by Dh by construction.
    """
    BH, T, Dh = q_heads.shape
    S = k_heads.shape[1]
    B = BH // num_heads
    tq = _choose_seq_tile(T)
    tk = _choose_seq_tile(S)
    grid = (B, T // tq, S // tk)

    kernel = functools.partial(_attention_kernel, causal=causal,
                               compute_dtype=compute_dtype)
    return pl.pallas_call(
        kernel,
        out_shape=jax.ShapeDtypeStruct((BH, T, Dh), q_heads.dtype),
        grid=grid,
        in_specs=[
            pl.BlockSpec((num_heads, tq, Dh), lambda b, qi, ki: (b, qi, 0)),
            pl.BlockSpec((num_heads, tk, Dh), lambda b, qi, ki: (b, ki, 0)),
            pl.BlockSpec((num_heads, tk, Dh), lambda b, qi, ki: (b, ki, 0)),
        ],
        out_specs=pl.BlockSpec((num_heads, tq, Dh), lambda b, qi, ki: (b, qi, 0)),
        scratch_shapes=[
            pltpu.VMEM((num_heads, tq, 1), jnp.float32),   # running max
            pltpu.VMEM((num_heads, tq, 1), jnp.float32),   # running (unmasked) exp-sum
            pltpu.VMEM((num_heads, tq, Dh), jnp.float32),  # running (masked) p @ V
        ],
        compiler_params=_cparams(("parallel", "parallel", "arbitrary")),
    )(q_heads, k_heads, v_heads)


# ------------------------------ full module ----------------------------------
class MultiHeadAttentionLegacyPallas:
    def __init__(self, embed_dim=32, num_heads=4, bias=True, kdim=None, vdim=None,
                 key=None, compute_dtype=None):
        self.embed_dim = embed_dim
        self.num_heads = num_heads
        self.head_dim = embed_dim // num_heads
        kdim = embed_dim if kdim is None else kdim
        vdim = embed_dim if vdim is None else vdim
        self.kdim, self.vdim = kdim, vdim
        self.compute_dtype = (_default_compute_dtype()
                              if compute_dtype is None else compute_dtype)

        key = jax.random.PRNGKey(42) if key is None else key
        keys = jax.random.split(key, 8)

        def init_w(k, in_d, out_d):
            return (0.02 * jax.random.normal(k, (in_d, out_d))).astype(jnp.float32)

        def init_b(k, out_d):
            if not bias:
                return jnp.zeros((1, out_d), jnp.float32)
            return (0.02 * jax.random.normal(k, (1, out_d))).astype(jnp.float32)

        self.wq, self.bq = init_w(keys[0], embed_dim, embed_dim), init_b(keys[1], embed_dim)
        self.wk, self.bk = init_w(keys[2], kdim, embed_dim), init_b(keys[3], embed_dim)
        self.wv, self.bv = init_w(keys[4], vdim, embed_dim), init_b(keys[5], embed_dim)
        self.wo, self.bo = init_w(keys[6], embed_dim, embed_dim), init_b(keys[7], embed_dim)

        # Kernel-side parameters: 1/sqrt(Dh) folded into the q projection
        # (removes the per-element q scale in the attention kernel) and weights
        # pre-cast to the MXU operand dtype (halves resident-weight VMEM when
        # bf16).  Biases stay f32 — they are added to the f32 accumulator.
        cd = self.compute_dtype
        scale = 1.0 / (self.head_dim ** 0.5)
        self.wq_k = (self.wq * scale).astype(cd)
        self.bq_k = self.bq * scale
        self.wk_k = self.wk.astype(cd)
        self.wv_k = self.wv.astype(cd)
        self.wo_k = self.wo.astype(cd)

        # Self-attention fast path: packed (E, 3E) weight -> one MXU weight push
        # and one lane-dense 3E-wide store per row tile instead of three.
        if kdim == embed_dim and vdim == embed_dim:
            self.w_qkv = jnp.concatenate([self.wq_k, self.wk_k, self.wv_k], axis=1)
            self.b_qkv = jnp.concatenate([self.bq_k, self.bk, self.bv], axis=1)
        else:
            self.w_qkv = None
            self.b_qkv = None
        # dropout=0.0 -> identity in forward.
        # TODO(synk): attn_mask path not implemented (the PyTorch module relies
        # on an un-imported einops `repeat`); only attn_mask=None is reproduced.

    def __call__(self, query, key, value, is_causal=False):
        bsz, tgt_len, embed_dim = query.shape
        src_len = key.shape[1]
        H, Dh = self.num_heads, self.head_dim
        cd = self.compute_dtype

        # Row-major 2-D views (free on contiguous buffers) for row-tiled matmuls.
        q2d = query.reshape(bsz * tgt_len, embed_dim)
        k2d = key.reshape(bsz * src_len, self.kdim)
        v2d = value.reshape(bsz * src_len, self.vdim)

        if (query is key) and (key is value) and self.w_qkv is not None:
            # Self-attention: single (M, E) @ (E, 3E) packed projection.
            qkv = multi_row_projection([q2d], [self.w_qkv], [self.b_qkv],
                                       compute_dtype=cd)[0]
            q2p = qkv[:, :embed_dim]
            k2p = qkv[:, embed_dim:2 * embed_dim]
            v2p = qkv[:, 2 * embed_dim:]
        elif tgt_len == src_len:
            # One launch: three row-tiled matmuls with all weights resident.
            q2p, k2p, v2p = multi_row_projection(
                [q2d, k2d, v2d],
                [self.wq_k, self.wk_k, self.wv_k],
                [self.bq_k, self.bk, self.bv],
                compute_dtype=cd)
        else:
            # Different row counts for q vs k/v: two launches.
            q2p = multi_row_projection([q2d], [self.wq_k], [self.bq_k],
                                       compute_dtype=cd)[0]
            k2p, v2p = multi_row_projection([k2d, v2d],
                                            [self.wk_k, self.wv_k],
                                            [self.bk, self.bv],
                                            compute_dtype=cd)

        # Legacy torch `.view(bsz*H, T, Dh)` — a raw row-major reinterpretation
        # (NOT the standard head transpose).  Free on contiguous HBM buffers;
        # doing it in-register inside a kernel would be a cross-lane relayout.
        q_h = q2p.reshape(bsz * H, tgt_len, Dh)
        k_h = k2p.reshape(bsz * H, src_len, Dh)
        v_h = v2p.reshape(bsz * H, src_len, Dh)

        ctx = fused_attention(q_h, k_h, v_h, H, causal=is_causal,
                              compute_dtype=cd)          # (B*H, T, Dh)

        # Legacy inverse view back to (B*T, E), then the row-tiled output proj.
        ctx2d = ctx.reshape(bsz * tgt_len, embed_dim)
        out = multi_row_projection([ctx2d], [self.wo_k], [self.bo],
                                   compute_dtype=cd)[0]
        return out.reshape(bsz, tgt_len, embed_dim)


# ------------------------------ reference ------------------------------------
def reference_forward(mod, query, key, value, is_causal=False):
    bsz, tgt_len, embed_dim = query.shape
    src_len = key.shape[1]
    H, Dh = mod.num_heads, mod.head_dim

    q = query.reshape(-1, embed_dim) @ mod.wq + mod.bq
    k = key.reshape(-1, mod.kdim) @ mod.wk + mod.bk
    v = value.reshape(-1, mod.vdim) @ mod.wv + mod.bv

    q = q.reshape(bsz * H, tgt_len, Dh)
    k = k.reshape(bsz * H, src_len, Dh)
    v = v.reshape(bsz * H, src_len, Dh)

    s = jnp.einsum("btd,bsd->bts", q, k) / (Dh ** 0.5)
    p = jax.nn.softmax(s, axis=-1)
    if is_causal:
        p = jnp.tril(p)
    o = jnp.einsum("bts,bsd->btd", p, v)
    o = o.reshape(bsz * tgt_len, embed_dim) @ mod.wo + mod.bo
    return o.reshape(bsz, tgt_len, embed_dim)


if __name__ == "__main__":
    embed_dim, num_heads = 32, 4
    bsz, tgt_len, src_len = 2, 8, 8

    root = jax.random.PRNGKey(0)
    kq, kk, kv, kp = jax.random.split(root, 4)
    query = jax.random.normal(kq, (bsz, tgt_len, embed_dim), dtype=jnp.float32)
    key = jax.random.normal(kk, (bsz, src_len, embed_dim), dtype=jnp.float32)
    value = jax.random.normal(kv, (bsz, src_len, embed_dim), dtype=jnp.float32)

    mod = MultiHeadAttentionLegacyPallas(embed_dim=embed_dim, num_heads=num_heads, key=kp)

    # Tolerance: EUP approx reciprocal in the softmax -> 2e-3 in f32; bf16 MXU
    # operands (v6e/v7x default) relax it to 2e-2.
    tol = 2e-3 if mod.compute_dtype == jnp.float32 else 2e-2

    out = jax.block_until_ready(mod(query, key, value, is_causal=False))
    ref = reference_forward(mod, query, key, value, is_causal=False)
    assert out.shape == (bsz, tgt_len, embed_dim)
    assert jnp.allclose(out, ref, atol=tol, rtol=tol), "mismatch (cross, non-causal)"

    out_c = jax.block_until_ready(mod(query, key, value, is_causal=True))
    ref_c = reference_forward(mod, query, key, value, is_causal=True)
    assert jnp.allclose(out_c, ref_c, atol=tol, rtol=tol), "mismatch (cross, causal)"

    # Self-attention fast path (packed (E, 3E) QKV weight, one projection launch).
    out_s = jax.block_until_ready(mod(query, query, query, is_causal=True))
    ref_s = reference_forward(mod, query, query, query, is_causal=True)
    assert jnp.allclose(out_s, ref_s, atol=tol, rtol=tol), "mismatch (self-attn, causal)"

    print("KERNEL_OK")
</pallas_src>

<mosaic_0001>
module attributes {stable_mosaic.version = 11 : i64} {
  func.func @_multi_proj_kernel(%arg0: i32, %arg1: memref<16x32xf32, #tpu.memory_space<vmem>>, %arg2: memref<16x32xf32, #tpu.memory_space<vmem>>, %arg3: memref<16x32xf32, #tpu.memory_space<vmem>>, %arg4: memref<32x32xf32, #tpu.memory_space<vmem>>, %arg5: memref<1x32xf32, #tpu.memory_space<vmem>>, %arg6: memref<32x32xf32, #tpu.memory_space<vmem>>, %arg7: memref<1x32xf32, #tpu.memory_space<vmem>>, %arg8: memref<32x32xf32, #tpu.memory_space<vmem>>, %arg9: memref<1x32xf32, #tpu.memory_space<vmem>>, %arg10: memref<16x32xf32, #tpu.memory_space<vmem>>, %arg11: memref<16x32xf32, #tpu.memory_space<vmem>>, %arg12: memref<16x32xf32, #tpu.memory_space<vmem>>) attributes {dimension_semantics = [#tpu.dimension_semantics<parallel>], iteration_bounds = array<i64: 1>, scalar_prefetch = 0 : i64, scratch_operands = 0 : i64, tpu.core_type = #tpu.core_type<tc>, window_params = [{transform_indices = @transform_0, window_bounds = array<i64: 16, 32>}, {transform_indices = @transform_1, window_bounds = array<i64: 16, 32>}, {transform_indices = @transform_2, window_bounds = array<i64: 16, 32>}, {pipeline_mode = #tpu.pipeline_mode<synchronous>, transform_indices = @transform_3, window_bounds = array<i64: 32, 32>}, {pipeline_mode = #tpu.pipeline_mode<synchronous>, transform_indices = @transform_4, window_bounds = array<i64: 1, 32>}, {pipeline_mode = #tpu.pipeline_mode<synchronous>, transform_indices = @transform_5, window_bounds = array<i64: 32, 32>}, {pipeline_mode = #tpu.pipeline_mode<synchronous>, transform_indices = @transform_6, window_bounds = array<i64: 1, 32>}, {pipeline_mode = #tpu.pipeline_mode<synchronous>, transform_indices = @transform_7, window_bounds = array<i64: 32, 32>}, {pipeline_mode = #tpu.pipeline_mode<synchronous>, transform_indices = @transform_8, window_bounds = array<i64: 1, 32>}, {transform_indices = @transform_9, window_bounds = array<i64: 16, 32>}, {transform_indices = @transform_10, window_bounds = array<i64: 16, 32>}, {transform_indices = @transform_11, window_bounds = array<i64: 16, 32>}]} {
    %c0 = arith.constant 0 : index
    %c0_0 = arith.constant 0 : index
    %0 = vector.load %arg1[%c0, %c0_0] : memref<16x32xf32, #tpu.memory_space<vmem>>, vector<16x32xf32>
    %c0_1 = arith.constant 0 : index
    %c0_2 = arith.constant 0 : index
    %1 = vector.load %arg4[%c0_1, %c0_2] : memref<32x32xf32, #tpu.memory_space<vmem>>, vector<32x32xf32>
    %cst = arith.constant dense<0.000000e+00> : vector<16x32xf32>
    %2 = tpu.matmul %0, %1, %cst {dimension_numbers = #tpu.dot_dimension_numbers<[1], [0], [0], [1], [0, 0, 1, 1], [], []>} : vector<16x32xf32>, vector<32x32xf32>, vector<16x32xf32> -> vector<16x32xf32>
    %c0_3 = arith.constant 0 : index
    %c0_4 = arith.constant 0 : index
    %3 = vector.load %arg5[%c0_3, %c0_4] : memref<1x32xf32, #tpu.memory_space<vmem>>, vector<1x32xf32>
    %4 = vector.broadcast %3 : vector<1x32xf32> to vector<16x32xf32>
    %5 = arith.addf %2, %4 : vector<16x32xf32>
    %c0_5 = arith.constant 0 : index
    %c0_6 = arith.constant 0 : index
    %6 = vector.load %arg10[%c0_5, %c0_6] : memref<16x32xf32, #tpu.memory_space<vmem>>, vector<16x32xf32>
    tpu.vector_store %arg10[%c0_5, %c0_6], %5 {strides = array<i32>} : memref<16x32xf32, #tpu.memory_space<vmem>>, vector<16x32xf32>,
    %c0_7 = arith.constant 0 : index
    %c0_8 = arith.constant 0 : index
    %7 = vector.load %arg2[%c0_7, %c0_8] : memref<16x32xf32, #tpu.memory_space<vmem>>, vector<16x32xf32>
    %c0_9 = arith.constant 0 : index
    %c0_10 = arith.constant 0 : index
    %8 = vector.load %arg6[%c0_9, %c0_10] : memref<32x32xf32, #tpu.memory_space<vmem>>, vector<32x32xf32>
    %cst_11 = arith.constant dense<0.000000e+00> : vector<16x32xf32>
    %9 = tpu.matmul %7, %8, %cst_11 {dimension_numbers = #tpu.dot_dimension_numbers<[1], [0], [0], [1], [0, 0, 1, 1], [], []>} : vector<16x32xf32>, vector<32x32xf32>, vector<16x32xf32> -> vector<16x32xf32>
    %c0_12 = arith.constant 0 : index
    %c0_13 = arith.constant 0 : index
    %10 = vector.load %arg7[%c0_12, %c0_13] : memref<1x32xf32, #tpu.memory_space<vmem>>, vector<1x32xf32>
    %11 = vector.broadcast %10 : vector<1x32xf32> to vector<16x32xf32>
    %12 = arith.addf %9, %11 : vector<16x32xf32>
    %c0_14 = arith.constant 0 : index
    %c0_15 = arith.constant 0 : index
    %13 = vector.load %arg11[%c0_14, %c0_15] : memref<16x32xf32, #tpu.memory_space<vmem>>, vector<16x32xf32>
    tpu.vector_store %arg11[%c0_14, %c0_15], %12 {strides = array<i32>} : memref<16x32xf32, #tpu.memory_space<vmem>>, vector<16x32xf32>,
    %c0_16 = arith.constant 0 : index
    %c0_17 = arith.constant 0 : index
    %14 = vector.load %arg3[%c0_16, %c0_17] : memref<16x32xf32, #tpu.memory_space<vmem>>, vector<16x32xf32>
    %c0_18 = arith.constant 0 : index
    %c0_19 = arith.constant 0 : index
    %15 = vector.load %arg8[%c0_18, %c0_19] : memref<32x32xf32, #tpu.memory_space<vmem>>, vector<32x32xf32>
    %cst_20 = arith.constant dense<0.000000e+00> : vector<16x32xf32>
    %16 = tpu.matmul %14, %15, %cst_20 {dimension_numbers = #tpu.dot_dimension_numbers<[1], [0], [0], [1], [0, 0, 1, 1], [], []>} : vector<16x32xf32>, vector<32x32xf32>, vector<16x32xf32> -> vector<16x32xf32>
    %c0_21 = arith.constant 0 : index
    %c0_22 = arith.constant 0 : index
    %17 = vector.load %arg9[%c0_21, %c0_22] : memref<1x32xf32, #tpu.memory_space<vmem>>, vector<1x32xf32>
    %18 = vector.broadcast %17 : vector<1x32xf32> to vector<16x32xf32>
    %19 = arith.addf %16, %18 : vector<16x32xf32>
    %c0_23 = arith.constant 0 : index
    %c0_24 = arith.constant 0 : index
    %20 = vector.load %arg12[%c0_23, %c0_24] : memref<16x32xf32, #tpu.memory_space<vmem>>, vector<16x32xf32>
    tpu.vector_store %arg12[%c0_23, %c0_24], %19 {strides = array<i32>} : memref<16x32xf32, #tpu.memory_space<vmem>>, vector<16x32xf32>,
    return
  }
  func.func @transform_0(%arg0: i32) -> (i32, i32) {
    %c0_i32 = arith.constant 0 : i32
    %c0_i32_0 = arith.constant 0 : i32
    return %arg0, %c0_i32 : i32, i32
  }
  func.func @transform_1(%arg0: i32) -> (i32, i32) {
    %c0_i32 = arith.constant 0 : i32
    %c0_i32_0 = arith.constant 0 : i32
    return %arg0, %c0_i32 : i32, i32
  }
  func.func @transform_2(%arg0: i32) -> (i32, i32) {
    %c0_i32 = arith.constant 0 : i32
    %c0_i32_0 = arith.constant 0 : i32
    return %arg0, %c0_i32 : i32, i32
  }
  func.func @transform_3(%arg0: i32) -> (i32, i32) {
    %c0_i32 = arith.constant 0 : i32
    %c0_i32_0 = arith.constant 0 : i32
    %c0_i32_1 = arith.constant 0 : i32
    return %c0_i32, %c0_i32_0 : i32, i32
  }
  func.func @transform_4(%arg0: i32) -> (i32, i32) {
    %c0_i32 = arith.constant 0 : i32
    %c0_i32_0 = arith.constant 0 : i32
    %c0_i32_1 = arith.constant 0 : i32
    return %c0_i32, %c0_i32_0 : i32, i32
  }
  func.func @transform_5(%arg0: i32) -> (i32, i32) {
    %c0_i32 = arith.constant 0 : i32
    %c0_i32_0 = arith.constant 0 : i32
    %c0_i32_1 = arith.constant 0 : i32
    return %c0_i32, %c0_i32_0 : i32, i32
  }
  func.func @transform_6(%arg0: i32) -> (i32, i32) {
    %c0_i32 = arith.constant 0 : i32
    %c0_i32_0 = arith.constant 0 : i32
    %c0_i32_1 = arith.constant 0 : i32
    return %c0_i32, %c0_i32_0 : i32, i32
  }
  func.func @transform_7(%arg0: i32) -> (i32, i32) {
    %c0_i32 = arith.constant 0 : i32
    %c0_i32_0 = arith.constant 0 : i32
    %c0_i32_1 = arith.constant 0 : i32
    return %c0_i32, %c0_i32_0 : i32, i32
  }
  func.func @transform_8(%arg0: i32) -> (i32, i32) {
    %c0_i32 = arith.constant 0 : i32
    %c0_i32_0 = arith.constant 0 : i32
    %c0_i32_1 = arith.constant 0 : i32
    return %c0_i32, %c0_i32_0 : i32, i32
  }
  func.func @transform_9(%arg0: i32) -> (i32, i32) {
    %c0_i32 = arith.constant 0 : i32
    %c0_i32_0 = arith.constant 0 : i32
    return %arg0, %c0_i32 : i32, i32
  }
  func.func @transform_10(%arg0: i32) -> (i32, i32) {
    %c0_i32 = arith.constant 0 : i32
    %c0_i32_0 = arith.constant 0 : i32
    return %arg0, %c0_i32 : i32, i32
  }
  func.func @transform_11(%arg0: i32) -> (i32, i32) {
    %c0_i32 = arith.constant 0 : i32
    %c0_i32_0 = arith.constant 0 : i32
    return %arg0, %c0_i32 : i32, i32
  }
}

</mosaic_0001>

<llo_original>
// kernel: tpu_custom_call.1
$region0: #{tpu_custom_call.1}
  #allocation0 [shape = 'u32[]', space=smem, size = 0x4, offset = 0x4, fixed_abs, tag = 'smem constant byte address 0x4 - core index']
  #allocation1 [shape = 'u32[144,128]{1,0:T(1,128)}', space=vmem, size = 0x12000, scoped, tag = 'internal scratch']
  %s0 = inlined_call_operand.hbm [shape: f32[16,32], index: 0, kind: input, shape index: {}]
  %s1 = inlined_call_operand.hbm [shape: f32[16,32], index: 1, kind: input, shape index: {}]
  %s2 = inlined_call_operand.hbm [shape: f32[16,32], index: 2, kind: input, shape index: {}]
  %s3 = inlined_call_operand.hbm [shape: f32[32,32], index: 3, kind: input, shape index: {}]
  %s4 = inlined_call_operand.vmem [shape: f32[1,32], index: 4, kind: input, shape index: {}]
  %s5 = inlined_call_operand.hbm [shape: f32[32,32], index: 5, kind: input, shape index: {}]
  %s6 = inlined_call_operand.vmem [shape: f32[1,32], index: 6, kind: input, shape index: {}]
  %s7 = inlined_call_operand.hbm [shape: f32[32,32], index: 7, kind: input, shape index: {}]
  %s8 = inlined_call_operand.vmem [shape: f32[1,32], index: 8, kind: input, shape index: {}]
  %s9 = inlined_call_operand.hbm [shape: f32[16,32], index: 9, kind: output, shape index: {0}]
  %s10 = inlined_call_operand.hbm [shape: f32[16,32], index: 10, kind: output, shape index: {1}]
  %s11 = inlined_call_operand.hbm [shape: f32[16,32], index: 11, kind: output, shape index: {2}]
  %12 = xla_tuple %s9, %s10, %s11
  %s13 = sld [smem:[#allocation0]]
  $region86: #{tpu_custom_call.1} parent=0
    _
  %s15 = ssub.s32 1, %s13
  %s16 = scalar_select 0, %s15, %s13
  $region1: #{tpu_custom_call.1} parent=0
    #allocation2 [shape = 'u8[8192]{0}', space=vmem, size = 0x2000, scoped, tag = 'input window, operand 0, single buffered']
    #allocation3 [shape = 's32[1]{0}', space=sflag, size = 0x4, scoped, tag = 'scoped memory for tpu_custom_call.1']
    #allocation4 [shape = 's32[1]{0}', space=sflag, size = 0x4, scoped, tag = 'scoped memory for tpu_custom_call.1']
    #allocation5 [shape = 'u8[8192]{0}', space=vmem, size = 0x2000, scoped, tag = 'input window, operand 1, single buffered']
    #allocation6 [shape = 's32[1]{0}', space=sflag, size = 0x4, scoped, tag = 'scoped memory for tpu_custom_call.1']
    #allocation7 [shape = 'u8[8192]{0}', space=vmem, size = 0x2000, scoped, tag = 'input window, operand 2, single buffered']
    #allocation8 [shape = 'u8[16384]{0}', space=vmem, size = 0x4000, scoped, tag = 'input window, operand 3, single buffered']
    #allocation9 [shape = 's32[1]{0}', space=sflag, size = 0x4, scoped, tag = 'scoped memory for tpu_custom_call.1']
    #allocation10 [shape = 'u8[16384]{0}', space=vmem, size = 0x4000, scoped, tag = 'input window, operand 5, single buffered']
    #allocation11 [shape = 'u8[16384]{0}', space=vmem, size = 0x4000, scoped, tag = 'input window, operand 7, single buffered']
    #allocation12 [shape = 's32[1]{0}', space=sflag, size = 0x4, scoped, tag = 'scoped memory for tpu_custom_call.1']
    #allocation13 [shape = 'u8[8192]{0}', space=vmem, size = 0x2000, scoped, tag = 'output window, operand 0, single buffered']
    #allocation14 [shape = 'u8[8192]{0}', space=vmem, size = 0x2000, scoped, tag = 'output window, operand 1, single buffered']
    #allocation15 [shape = 's32[1]{0}', space=sflag, size = 0x4, scoped, tag = 'scoped memory for tpu_custom_call.1']
    #allocation16 [shape = 'u8[8192]{0}', space=vmem, size = 0x2000, scoped, tag = 'output window, operand 2, single buffered']
    %17 = vsyncpa [#allocation3], 0
    %18 = vsyncpa [#allocation6], 0
    %19 = vsyncpa [#allocation9], 0
    %20 = vsyncpa [#allocation12], 0
    %21 = vsyncpa [#allocation4], 0
    %22 = vsyncpa [#allocation15], 0
    // Predicated region
    $region2: #{tpu_custom_call.1} parent=1 // pred_check
      _
    $region3: #{tpu_custom_call.1} parent=1 // pred_check_branch
      %24 = sbr.rel (0) target = $region5
    $region4: #{tpu_custom_call.1} parent=1 // pred_region
      %s26 = ssub.s32 256, 256
      %27 = vsyncadd [#allocation3], %s26
      %s28 = sshll.u32 [#allocation2], 4
      %s29 = int_to_ptr.vmem [resolvable:$true] %s28
      %34 = dma.hbm_to_vmem [thread:$0]  %s0, 256, %s29, [#allocation3], 128, 128, 8
    $region5: #{tpu_custom_call.1} parent=1 // pred_fallthru
      _
    // Predicated region
    $region6: #{tpu_custom_call.1} parent=1 // pred_check
      _
    $region7: #{tpu_custom_call.1} parent=1 // pred_check_branch
      %36 = sbr.rel (0) target = $region9
    $region8: #{tpu_custom_call.1} parent=1 // pred_region
      %s38 = ssub.s32 256, 256
      %39 = vsyncadd [#allocation6], %s38
      %s40 = sshll.u32 [#allocation5], 4
      %s41 = int_to_ptr.vmem [resolvable:$true] %s40
      %46 = dma.hbm_to_vmem [thread:$0]  %s1, 256, %s41, [#allocation6], 128, 128, 8
    $region9: #{tpu_custom_call.1} parent=1 // pred_fallthru
      _
    // Predicated region
    $region10: #{tpu_custom_call.1} parent=1 // pred_check
      _
    $region11: #{tpu_custom_call.1} parent=1 // pred_check_branch
      %48 = sbr.rel (0) target = $region13
    $region12: #{tpu_custom_call.1} parent=1 // pred_region
      %s50 = ssub.s32 256, 256
      %51 = vsyncadd [#allocation6], %s50
      %s52 = sshll.u32 [#allocation7], 4
      %s53 = int_to_ptr.vmem [resolvable:$true] %s52
      %58 = dma.hbm_to_vmem [thread:$0]  %s2, 256, %s53, [#allocation6], 128, 128, 8
    $region13: #{tpu_custom_call.1} parent=1 // pred_fallthru
      _
    // Predicated region
    $region14: #{tpu_custom_call.1} parent=1 // pred_check
      _
    $region15: #{tpu_custom_call.1} parent=1 // pred_check_branch
      %60 = sbr.rel (0) target = $region17
    $region16: #{tpu_custom_call.1} parent=1 // pred_region
      %s62 = ssub.s32 512, 512
      %63 = vsyncadd [#allocation9], %s62
      %s64 = sshll.u32 [#allocation8], 4
      %s65 = int_to_ptr.vmem [resolvable:$true] %s64
      %70 = dma.hbm_to_vmem [thread:$0]  %s3, 512, %s65, [#allocation9], 128, 128, 8
    $region17: #{tpu_custom_call.1} parent=1 // pred_fallthru
      _
    // Predicated region
    $region18: #{tpu_custom_call.1} parent=1 // pred_check
      _
    $region19: #{tpu_custom_call.1} parent=1 // pred_check_branch
      %72 = sbr.rel (0) target = $region21
    $region20: #{tpu_custom_call.1} parent=1 // pred_region
      _
    $region21: #{tpu_custom_call.1} parent=1 // pred_fallthru
      _
    // Predicated region
    $region22: #{tpu_custom_call.1} parent=1 // pred_check
      _
    $region23: #{tpu_custom_call.1} parent=1 // pred_check_branch
      %74 = sbr.rel (0) target = $region25
    $region24: #{tpu_custom_call.1} parent=1 // pred_region
      %s76 = ssub.s32 512, 512
      %77 = vsyncadd [#allocation9], %s76
      %s78 = sshll.u32 [#allocation10], 4
      %s79 = int_to_ptr.vmem [resolvable:$true] %s78
      %84 = dma.hbm_to_vmem [thread:$0]  %s5, 512, %s79, [#allocation9], 128, 128, 8
    $region25: #{tpu_custom_call.1} parent=1 // pred_fallthru
      _
    // Predicated region
    $region26: #{tpu_custom_call.1} parent=1 // pred_check
      _
    $region27: #{tpu_custom_call.1} parent=1 // pred_check_branch
      %86 = sbr.rel (0) target = $region29
    $region28: #{tpu_custom_call.1} parent=1 // pred_region
      _
    $region29: #{tpu_custom_call.1} parent=1 // pred_fallthru
      _
    // Predicated region
    $region30: #{tpu_custom_call.1} parent=1 // pred_check
      _
    $region31: #{tpu_custom_call.1} parent=1 // pred_check_branch
      %88 = sbr.rel (0) target = $region33
    $region32: #{tpu_custom_call.1} parent=1 // pred_region
      %s90 = ssub.s32 512, 512
      %91 = vsyncadd [#allocation12], %s90
      %s92 = sshll.u32 [#allocation11], 4
      %s93 = int_to_ptr.vmem [resolvable:$true] %s92
      %98 = dma.hbm_to_vmem [thread:$0]  %s7, 512, %s93, [#allocation12], 128, 128, 8
    $region33: #{tpu_custom_call.1} parent=1 // pred_fallthru
      _
    // Predicated region
    $region34: #{tpu_custom_call.1} parent=1 // pred_check
      _
    $region35: #{tpu_custom_call.1} parent=1 // pred_check_branch
      %100 = sbr.rel (0) target = $region37
    $region36: #{tpu_custom_call.1} parent=1 // pred_region
      _
    $region37: #{tpu_custom_call.1} parent=1 // pred_fallthru
      _
    // Predicated region
    $region38: #{tpu_custom_call.1} parent=1 // pred_check
      _
    $region39: #{tpu_custom_call.1} parent=1 // pred_check_branch
      %102 = sbr.rel (0) target = $region41
    $region40: #{tpu_custom_call.1} parent=1 // pred_region
      %103 = dma.done [#allocation3], 256
    $region41: #{tpu_custom_call.1} parent=1 // pred_fallthru
      _
    // Predicated region
    $region42: #{tpu_custom_call.1} parent=1 // pred_check
      _
    $region43: #{tpu_custom_call.1} parent=1 // pred_check_branch
      %105 = sbr.rel (0) target = $region45
    $region44: #{tpu_custom_call.1} parent=1 // pred_region
      %106 = dma.done [#allocation6], 256
    $region45: #{tpu_custom_call.1} parent=1 // pred_fallthru
      _
    // Predicated region
    $region46: #{tpu_custom_call.1} parent=1 // pred_check
      _
    $region47: #{tpu_custom_call.1} parent=1 // pred_check_branch
      %108 = sbr.rel (0) target = $region49
    $region48: #{tpu_custom_call.1} parent=1 // pred_region
      %109 = dma.done [#allocation6], 256
    $region49: #{tpu_custom_call.1} parent=1 // pred_fallthru
      _
    // Predicated region
    $region50: #{tpu_custom_call.1} parent=1 // pred_check
      _
    $region51: #{tpu_custom_call.1} parent=1 // pred_check_branch
      %111 = sbr.rel (0) target = $region53
    $region52: #{tpu_custom_call.1} parent=1 // pred_region
      %112 = dma.done [#allocation9], 512
    $region53: #{tpu_custom_call.1} parent=1 // pred_fallthru
      _
    // Predicated region
    $region54: #{tpu_custom_call.1} parent=1 // pred_check
      _
    $region55: #{tpu_custom_call.1} parent=1 // pred_check_branch
      %114 = sbr.rel (0) target = $region57
    $region56: #{tpu_custom_call.1} parent=1 // pred_region
      %115 = dma.done [#allocation9], 512
    $region57: #{tpu_custom_call.1} parent=1 // pred_fallthru
      _
    // Predicated region
    $region58: #{tpu_custom_call.1} parent=1 // pred_check
      _
    $region59: #{tpu_custom_call.1} parent=1 // pred_check_branch
      %117 = sbr.rel (0) target = $region61
    $region60: #{tpu_custom_call.1} parent=1 // pred_region
      %118 = dma.done [#allocation12], 512
    $region61: #{tpu_custom_call.1} parent=1 // pred_fallthru
      _
    %v119 = vld [vmem:[#allocation2] sm:$0xff]
    %v120 = vld [vmem:[#allocation2 + $0x8] sm:$0xff]
    %v121 = vld [vmem:[#allocation8] sm:$0xff]
    %v122 = vld [vmem:[#allocation8 + $0x8] sm:$0xff]
    %v123 = vld [vmem:[#allocation8 + $0x10] sm:$0xff]
    %v124 = vld [vmem:[#allocation8 + $0x18] sm:$0xff]
    %v125 = vld [vmem:[%s4] sm:$0x1]
    %v127 = vlaneseq
    %v128 = vshrl.u32 %v127, 7
    %v129 = vsub.s32 0, %v128
    %v130 = vrot.slane %v125, %v129
    %vm132 = vcmask 261120
    %v134 = vsel %vm132, %v119, 0
    %v137 = vsel %vm132, %v120, 0
    %139 = vmatprep.subr.mxu0 0.0
    %140 = vmatpush1.msra.mxu0 0.0
    %141 = vmatprep.subr.mxu0 0.0
    %142 = vmatpush1.msra.mxu0 0.0
    %143 = vmatprep.subr.mxu0 0.0
    %144 = vmatpush1.msra.mxu0 0.0
    %145 = vmatprep.subr.mxu0 0.0
    %146 = vmatpush1.msra.mxu0 0.0
    %147 = vmatprep.subr.mxu0 0.0
    %148 = vmatpush1.msra.mxu0 0.0
    %149 = vmatprep.subr.mxu0 0.0
    %150 = vmatpush1.msra.mxu0 0.0
    %151 = vmatprep.subr.mxu0 0.0
    %152 = vmatpush1.msra.mxu0 0.0
    %153 = vmatprep.subr.mxu0 0.0
    %154 = vmatpush1.msra.mxu0 0.0
    %155 = vmatprep.subr.mxu0 0.0
    %156 = vmatpush1.msra.mxu0 0.0
    %157 = vmatprep.subr.mxu0 0.0
    %158 = vmatpush1.msra.mxu0 0.0
    %159 = vmatprep.subr.mxu0 0.0
    %160 = vmatpush1.msra.mxu0 0.0
    %161 = vmatprep.subr.mxu0 0.0
    %162 = vmatpush1.msra.mxu0 0.0
    %163 = vmatprep.subr.mxu0 0.0
    %164 = vmatpush1.msra.mxu0 %v124
    %165 = vmatprep.subr.mxu0 0.0
    %166 = vmatpush1.msra.mxu0 %v123
    %167 = vmatprep.subr.mxu0 0.0
    %168 = vmatpush1.msra.mxu0 %v122
    %169 = vmatprep.subr.mxu0 0.0
    %170 = vmatpush1.msra.mxu0 %v121
    %171 = vmatprep.subr.mxu0 0.0
    %172 = vmatpush2.msra.mxu0 0.0
    %173 = vmatprep.subr.mxu0 0.0
    %174 = vmatpush2.msra.mxu0 0.0
    %175 = vmatprep.subr.mxu0 0.0
    %176 = vmatpush2.msra.mxu0 0.0
    %177 = vmatprep.subr.mxu0 0.0
    %178 = vmatpush2.msra.mxu0 0.0
    %179 = vmatprep.subr.mxu0 0.0
    %180 = vmatpush2.msra.mxu0 0.0
    %181 = vmatprep.subr.mxu0 0.0
    %182 = vmatpush2.msra.mxu0 0.0
    %183 = vmatprep.subr.mxu0 0.0
    %184 = vmatpush2.msra.mxu0 0.0
    %185 = vmatprep.subr.mxu0 0.0
    %186 = vmatpush2.msra.mxu0 0.0
    %187 = vmatprep.subr.mxu0 0.0
    %188 = vmatpush2.msra.mxu0 0.0
    %189 = vmatprep.subr.mxu0 0.0
    %190 = vmatpush2.msra.mxu0 0.0
    %191 = vmatprep.subr.mxu0 0.0
    %192 = vmatpush2.msra.mxu0 0.0
    %193 = vmatprep.subr.mxu0 0.0
    %194 = vmatpush2.msra.mxu0 0.0
    %195 = vmatprep.subr.mxu0 0.0
    %196 = vmatpush2.msra.mxu0 0.0
    %197 = vmatprep.subr.mxu0 0.0
    %198 = vmatpush2.msra.mxu0 0.0
    %199 = vmatprep.subr.mxu0 0.0
    %200 = vmatpush2.msra.mxu0 0.0
    %201 = vmatprep.subr.mxu0 0.0
    %202 = vmatpush2.msra.mxu0 0.0
    %203 = vmatprep.mubr.f32.mxu0 0.0
    %204 = vmatmul.mubr.f32.gmra.mxu0 %v134
    %v205 = vpop.f32.mrf.mxu0
    %v206 = vadd.f32 %v130, %v205
    %v207 = vpop.f32.mrf.mxu0
    %208 = vmatprep.mubr.f32.mxu0 0.0
    %209 = vmatmul.mubr.f32.gmra.mxu0 %v137
    %v210 = vpop.f32.mrf.mxu0
    %v211 = vadd.f32 %v130, %v210
    %v212 = vpop.f32.mrf.mxu0
    %213 = vdwg.mxu0
    %214 = vst.msk [vmem:[#allocation13] sm:$0xff] %vm132, %v206
    %215 = vst.msk [vmem:[#allocation13 + $0x8] sm:$0xff] %vm132, %v211
    %v216 = vld [vmem:[#allocation5] sm:$0xff]
    %v217 = vld [vmem:[#allocation5 + $0x8] sm:$0xff]
    %v218 = vld [vmem:[#allocation10] sm:$0xff]
    %v219 = vld [vmem:[#allocation10 + $0x8] sm:$0xff]
    %v220 = vld [vmem:[#allocation10 + $0x10] sm:$0xff]
    %v221 = vld [vmem:[#allocation10 + $0x18] sm:$0xff]
    %v222 = vld [vmem:[%s6] sm:$0x1]
    %v224 = vlaneseq
    %v225 = vshrl.u32 %v224, 7
    %v226 = vsub.s32 0, %v225
    %v227 = vrot.slane %v222, %v226
    %v230 = vsel %vm132, %v216, 0
    %v233 = vsel %vm132, %v217, 0
    %235 = vmatprep.subr.mxu0 0.0
    %236 = vmatpush1.msra.mxu0 0.0
    %237 = vmatprep.subr.mxu0 0.0
    %238 = vmatpush1.msra.mxu0 0.0
    %239 = vmatprep.subr.mxu0 0.0
    %240 = vmatpush1.msra.mxu0 0.0
    %241 = vmatprep.subr.mxu0 0.0
    %242 = vmatpush1.msra.mxu0 0.0
    %243 = vmatprep.subr.mxu0 0.0
    %244 = vmatpush1.msra.mxu0 0.0
    %245 = vmatprep.subr.mxu0 0.0
    %246 = vmatpush1.msra.mxu0 0.0
    %247 = vmatprep.subr.mxu0 0.0
    %248 = vmatpush1.msra.mxu0 0.0
    %249 = vmatprep.subr.mxu0 0.0
    %250 = vmatpush1.msra.mxu0 0.0
    %251 = vmatprep.subr.mxu0 0.0
    %252 = vmatpush1.msra.mxu0 0.0
    %253 = vmatprep.subr.mxu0 0.0
    %254 = vmatpush1.msra.mxu0 0.0
    %255 = vmatprep.subr.mxu0 0.0
    %256 = vmatpush1.msra.mxu0 0.0
    %257 = vmatprep.subr.mxu0 0.0
    %258 = vmatpush1.msra.mxu0 0.0
    %259 = vmatprep.subr.mxu0 0.0
    %260 = vmatpush1.msra.mxu0 %v221
    %261 = vmatprep.subr.mxu0 0.0
    %262 = vmatpush1.msra.mxu0 %v220
    %263 = vmatprep.subr.mxu0 0.0
    %264 = vmatpush1.msra.mxu0 %v219
    %265 = vmatprep.subr.mxu0 0.0
    %266 = vmatpush1.msra.mxu0 %v218
    %267 = vmatprep.subr.mxu0 0.0
    %268 = vmatpush2.msra.mxu0 0.0
    %269 = vmatprep.subr.mxu0 0.0
    %270 = vmatpush2.msra.mxu0 0.0
    %271 = vmatprep.subr.mxu0 0.0
    %272 = vmatpush2.msra.mxu0 0.0
    %273 = vmatprep.subr.mxu0 0.0
    %274 = vmatpush2.msra.mxu0 0.0
    %275 = vmatprep.subr.mxu0 0.0
    %276 = vmatpush2.msra.mxu0 0.0
    %277 = vmatprep.subr.mxu0 0.0
    %278 = vmatpush2.msra.mxu0 0.0
    %279 = vmatprep.subr.mxu0 0.0
    %280 = vmatpush2.msra.mxu0 0.0
    %281 = vmatprep.subr.mxu0 0.0
    %282 = vmatpush2.msra.mxu0 0.0
    %283 = vmatprep.subr.mxu0 0.0
    %284 = vmatpush2.msra.mxu0 0.0
    %285 = vmatprep.subr.mxu0 0.0
    %286 = vmatpush2.msra.mxu0 0.0
    %287 = vmatprep.subr.mxu0 0.0
    %288 = vmatpush2.msra.mxu0 0.0
    %289 = vmatprep.subr.mxu0 0.0
    %290 = vmatpush2.msra.mxu0 0.0
    %291 = vmatprep.subr.mxu0 0.0
    %292 = vmatpush2.msra.mxu0 0.0
    %293 = vmatprep.subr.mxu0 0.0
    %294 = vmatpush2.msra.mxu0 0.0
    %295 = vmatprep.subr.mxu0 0.0
    %296 = vmatpush2.msra.mxu0 0.0
    %297 = vmatprep.subr.mxu0 0.0
    %298 = vmatpush2.msra.mxu0 0.0
    %299 = vmatprep.mubr.f32.mxu0 0.0
    %300 = vmatmul.mubr.f32.gmra.mxu0 %v230
    %v301 = vpop.f32.mrf.mxu0
    %v302 = vadd.f32 %v227, %v301
    %v303 = vpop.f32.mrf.mxu0
    %304 = vmatprep.mubr.f32.mxu0 0.0
    %305 = vmatmul.mubr.f32.gmra.mxu0 %v233
    %v306 = vpop.f32.mrf.mxu0
    %v307 = vadd.f32 %v227, %v306
    %v308 = vpop.f32.mrf.mxu0
    %309 = vdwg.mxu0
    %310 = vst.msk [vmem:[#allocation14] sm:$0xff] %vm132, %v302
    %311 = vst.msk [vmem:[#allocation14 + $0x8] sm:$0xff] %vm132, %v307
    %v312 = vld [vmem:[#allocation7] sm:$0xff]
    %v313 = vld [vmem:[#allocation7 + $0x8] sm:$0xff]
    %v314 = vld [vmem:[#allocation11] sm:$0xff]
    %v315 = vld [vmem:[#allocation11 + $0x8] sm:$0xff]
    %v316 = vld [vmem:[#allocation11 + $0x10] sm:$0xff]
    %v317 = vld [vmem:[#allocation11 + $0x18] sm:$0xff]
    %v318 = vld [vmem:[%s8] sm:$0x1]
    %v320 = vlaneseq
    %v321 = vshrl.u32 %v320, 7
    %v322 = vsub.s32 0, %v321
    %v323 = vrot.slane %v318, %v322
    %v326 = vsel %vm132, %v312, 0
    %v329 = vsel %vm132, %v313, 0
    %331 = vmatprep.subr.mxu0 0.0
    %332 = vmatpush1.msra.mxu0 0.0
    %333 = vmatprep.subr.mxu0 0.0
    %334 = vmatpush1.msra.mxu0 0.0
    %335 = vmatprep.subr.mxu0 0.0
    %336 = vmatpush1.msra.mxu0 0.0
    %337 = vmatprep.subr.mxu0 0.0
    %338 = vmatpush1.msra.mxu0 0.0
    %339 = vmatprep.subr.mxu0 0.0
    %340 = vmatpush1.msra.mxu0 0.0
    %341 = vmatprep.subr.mxu0 0.0
    %342 = vmatpush1.msra.mxu0 0.0
    %343 = vmatprep.subr.mxu0 0.0
    %344 = vmatpush1.msra.mxu0 0.0
    %345 = vmatprep.subr.mxu0 0.0
    %346 = vmatpush1.msra.mxu0 0.0
    %347 = vmatprep.subr.mxu0 0.0
    %348 = vmatpush1.msra.mxu0 0.0
    %349 = vmatprep.subr.mxu0 0.0
    %350 = vmatpush1.msra.mxu0 0.0
    %351 = vmatprep.subr.mxu0 0.0
    %352 = vmatpush1.msra.mxu0 0.0
    %353 = vmatprep.subr.mxu0 0.0
    %354 = vmatpush1.msra.mxu0 0.0
    %355 = vmatprep.subr.mxu0 0.0
    %356 = vmatpush1.msra.mxu0 %v317
    %357 = vmatprep.subr.mxu0 0.0
    %358 = vmatpush1.msra.mxu0 %v316
    %359 = vmatprep.subr.mxu0 0.0
    %360 = vmatpush1.msra.mxu0 %v315
    %361 = vmatprep.subr.mxu0 0.0
    %362 = vmatpush1.msra.mxu0 %v314
    %363 = vmatprep.subr.mxu0 0.0
    %364 = vmatpush2.msra.mxu0 0.0
    %365 = vmatprep.subr.mxu0 0.0
    %366 = vmatpush2.msra.mxu0 0.0
    %367 = vmatprep.subr.mxu0 0.0
    %368 = vmatpush2.msra.mxu0 0.0
    %369 = vmatprep.subr.mxu0 0.0
    %370 = vmatpush2.msra.mxu0 0.0
    %371 = vmatprep.subr.mxu0 0.0
    %372 = vmatpush2.msra.mxu0 0.0
    %373 = vmatprep.subr.mxu0 0.0
    %374 = vmatpush2.msra.mxu0 0.0
    %375 = vmatprep.subr.mxu0 0.0
    %376 = vmatpush2.msra.mxu0 0.0
    %377 = vmatprep.subr.mxu0 0.0
    %378 = vmatpush2.msra.mxu0 0.0
    %379 = vmatprep.subr.mxu0 0.0
    %380 = vmatpush2.msra.mxu0 0.0
    %381 = vmatprep.subr.mxu0 0.0
    %382 = vmatpush2.msra.mxu0 0.0
    %383 = vmatprep.subr.mxu0 0.0
    %384 = vmatpush2.msra.mxu0 0.0
    %385 = vmatprep.subr.mxu0 0.0
    %386 = vmatpush2.msra.mxu0 0.0
    %387 = vmatprep.subr.mxu0 0.0
    %388 = vmatpush2.msra.mxu0 0.0
    %389 = vmatprep.subr.mxu0 0.0
    %390 = vmatpush2.msra.mxu0 0.0
    %391 = vmatprep.subr.mxu0 0.0
    %392 = vmatpush2.msra.mxu0 0.0
    %393 = vmatprep.subr.mxu0 0.0
    %394 = vmatpush2.msra.mxu0 0.0
    %395 = vmatprep.mubr.f32.mxu0 0.0
    %396 = vmatmul.mubr.f32.gmra.mxu0 %v326
    %v397 = vpop.f32.mrf.mxu0
    %v398 = vadd.f32 %v323, %v397
    %v399 = vpop.f32.mrf.mxu0
    %400 = vmatprep.mubr.f32.mxu0 0.0
    %401 = vmatmul.mubr.f32.gmra.mxu0 %v329
    %v402 = vpop.f32.mrf.mxu0
    %v403 = vadd.f32 %v323, %v402
    %v404 = vpop.f32.mrf.mxu0
    %405 = vdwg.mxu0
    %406 = vst.msk [vmem:[#allocation16] sm:$0xff] %vm132, %v398
    %407 = vst.msk [vmem:[#allocation16 + $0x8] sm:$0xff] %vm132, %v403
    // Predicated region
    $region62: #{tpu_custom_call.1} parent=1 // pred_check
      _
    $region63: #{tpu_custom_call.1} parent=1 // pred_check_branch
      %409 = sbr.rel (0) target = $region65
    $region64: #{tpu_custom_call.1} parent=1 // pred_region
      %s411 = ssub.s32 256, 256
      %412 = vsyncadd [#allocation4], %s411
      %s413 = sshll.u32 [#allocation13], 4
      %s414 = int_to_ptr.vmem [resolvable:$true] %s413
      %419 = dma.vmem_to_hbm [thread:$0]  %s414, 256, %s9, [#allocation4], 128, 128, 8
    $region65: #{tpu_custom_call.1} parent=1 // pred_fallthru
      _
    // Predicated region
    $region66: #{tpu_custom_call.1} parent=1 // pred_check
      _
    $region67: #{tpu_custom_call.1} parent=1 // pred_check_branch
      %421 = sbr.rel (0) target = $region69
    $region68: #{tpu_custom_call.1} parent=1 // pred_region
      %s423 = ssub.s32 256, 256
      %424 = vsyncadd [#allocation15], %s423
      %s425 = sshll.u32 [#allocation14], 4
      %s426 = int_to_ptr.vmem [resolvable:$true] %s425
      %431 = dma.vmem_to_hbm [thread:$0]  %s426, 256, %s10, [#allocation15], 128, 128, 8
    $region69: #{tpu_custom_call.1} parent=1 // pred_fallthru
      _
    // Predicated region
    $region70: #{tpu_custom_call.1} parent=1 // pred_check
      _
    $region71: #{tpu_custom_call.1} parent=1 // pred_check_branch
      %433 = sbr.rel (0) target = $region73
    $region72: #{tpu_custom_call.1} parent=1 // pred_region
      %s435 = ssub.s32 256, 256
      %436 = vsyncadd [#allocation15], %s435
      %s437 = sshll.u32 [#allocation16], 4
      %s438 = int_to_ptr.vmem [resolvable:$true] %s437
      %443 = dma.vmem_to_hbm [thread:$0]  %s438, 256, %s11, [#allocation15], 128, 128, 8
    $region73: #{tpu_custom_call.1} parent=1 // pred_fallthru
      _
    // Predicated region
    $region74: #{tpu_custom_call.1} parent=1 // pred_check
      _
    $region75: #{tpu_custom_call.1} parent=1 // pred_check_branch
      %445 = sbr.rel (0) target = $region77
    $region76: #{tpu_custom_call.1} parent=1 // pred_region
      %446 = dma.done [#allocation4], 256
    $region77: #{tpu_custom_call.1} parent=1 // pred_fallthru
      _
    // Predicated region
    $region78: #{tpu_custom_call.1} parent=1 // pred_check
      _
    $region79: #{tpu_custom_call.1} parent=1 // pred_check_branch
      %448 = sbr.rel (0) target = $region81
    $region80: #{tpu_custom_call.1} parent=1 // pred_region
      %449 = dma.done [#allocation15], 256
    $region81: #{tpu_custom_call.1} parent=1 // pred_fallthru
      _
    // Predicated region
    $region82: #{tpu_custom_call.1} parent=1 // pred_check
      _
    $region83: #{tpu_custom_call.1} parent=1 // pred_check_branch
      %451 = sbr.rel (0) target = $region85
    $region84: #{tpu_custom_call.1} parent=1 // pred_region
      %452 = dma.done [#allocation15], 256
    $region85: #{tpu_custom_call.1} parent=1 // pred_fallthru
      _
    %453 = vsyncpa [#allocation3], 1
    %454 = vsyncpa [#allocation6], 1
    %455 = vsyncpa [#allocation9], 1
    %456 = vsyncpa [#allocation12], 1
    %457 = vsyncpa [#allocation4], 1
    %458 = vsyncpa [#allocation15], 1

</llo_original>
